<compile_context>
chip_gen: v6e
topology: v6e:2x2x1
jax: 0.10.0
libtpu: 0.0.40
codegen_flags: <defaults>
</compile_context>

<pallas_src>
import functools

import jax
import jax.numpy as jnp
from jax.experimental import pallas as pl
from jax.experimental.pallas import tpu as pltpu


def _round_up(x: int, m: int) -> int:
    return ((x + m - 1) // m) * m


def _vmem_cap_bytes() -> int:
    # Generation-aware VMEM ceiling (~80% of per-core physical VMEM), with a
    # conservative fallback if the hardware query is unavailable.
    try:
        cap = int(pltpu.get_tpu_info().vmem_capacity_bytes)
    except Exception:
        cap = 64 * 1024 * 1024
    return int(cap * 0.8)


def _mlm_head_kernel(x_ref, wt_ref, b_ref, o_ref):
    # x_ref: (tm, D) bf16   wt_ref: (D, tn) bf16   b_ref: (1, tn) f32
    # o_ref: (tm, tn) f32
    acc = jnp.dot(x_ref[...], wt_ref[...], preferred_element_type=jnp.float32)
    o_ref[...] = (acc + b_ref[...]).astype(o_ref.dtype)


def prepare_classifier_params(weight, bias, *, tn=512, compute_dtype=jnp.bfloat16):
    """One-time parameter prep (do NOT run per forward call).

    weight: [V, D] (PyTorch nn.Linear layout); bias: [V].
    Returns (w_t [D, Vp] in compute_dtype, bias2d [1, Vp] f32, V).
    """
    V, D = weight.shape
    tn_eff = min(tn, _round_up(V, 128))        # multiple of 128
    Vp = _round_up(V, tn_eff)
    w_t = weight.astype(compute_dtype).T       # (D, V): MXU-native layout
    b2d = bias.astype(jnp.float32).reshape(1, V)
    if Vp != V:
        w_t = jnp.pad(w_t, ((0, 0), (0, Vp - V)))
        b2d = jnp.pad(b2d, ((0, 0), (0, Vp - V)))
    return w_t, b2d, V


@functools.partial(
    jax.jit,
    static_argnames=("vocab_size", "tm", "tn", "compute_dtype", "out_dtype"),
)
def bimamba_mlm_head(pooled_output, w_t, b2d, vocab_size, *, tm=512, tn=512,
                     compute_dtype=jnp.bfloat16, out_dtype=jnp.float32):
    """pooled_output: [B, S, D]; w_t: [D, Vp] (prepped); b2d: [1, Vp] (prepped)."""
    B, S, D = pooled_output.shape
    Dw, Vp = w_t.shape
    assert Dw == D
    M = B * S

    # Effective tile sizes: clamp to the (padded) problem size so tiny demo
    # shapes do not force huge padding, while large shapes get big tiles.
    tm_eff = min(tm, _round_up(M, 8))
    tn_eff = min(tn, Vp)
    while Vp % tn_eff != 0:      # Vp is a multiple of 128, so this terminates
        tn_eff -= 128

    Mp = _round_up(M, tm_eff)

    # Activation glue: flatten, cast to the MXU compute dtype, pad ragged tail.
    x2d = pooled_output.reshape(M, D).astype(compute_dtype)
    if Mp != M:
        x2d = jnp.pad(x2d, ((0, Mp - M), (0, 0)))

    # Double-buffered per-step VMEM footprint, bounded by the chip's capacity.
    cb = jnp.dtype(compute_dtype).itemsize
    ob = jnp.dtype(out_dtype).itemsize
    tile_bytes = 2 * (tm_eff * D * cb + D * tn_eff * cb
                      + tn_eff * 4 + tm_eff * tn_eff * ob)
    vmem_limit = int(min(_vmem_cap_bytes(), max(tile_bytes + (8 << 20), 32 << 20)))

    # Grid: vocab tiles OUTER ("parallel" -> megacore shards V, weight read
    # once in aggregate), token tiles INNER ("arbitrary" -> weight tile block
    # index constant across the sweep, so it stays resident in VMEM).
    grid = (Vp // tn_eff, Mp // tm_eff)

    out = pl.pallas_call(
        _mlm_head_kernel,
        out_shape=jax.ShapeDtypeStruct((Mp, Vp), out_dtype),
        grid_spec=pltpu.PrefetchScalarGridSpec(
            num_scalar_prefetch=0,
            grid=grid,
            in_specs=[
                pl.BlockSpec((tm_eff, D), lambda j, i: (i, 0)),   # activations
                pl.BlockSpec((D, tn_eff), lambda j, i: (0, j)),   # weight (D,V)
                pl.BlockSpec((1, tn_eff), lambda j, i: (0, j)),   # bias
            ],
            out_specs=pl.BlockSpec((tm_eff, tn_eff), lambda j, i: (i, j)),
        ),
        compiler_params=pltpu.CompilerParams(
            dimension_semantics=("parallel", "arbitrary"),
            vmem_limit_bytes=vmem_limit,
        ),
    )(x2d, w_t, b2d)

    if Mp != M or Vp != vocab_size:
        out = out[:M, :vocab_size]
    return out.reshape(B, S, vocab_size)


if __name__ == "__main__":
    # Small config consistent with the module: d_model=32, vocab_size=128.
    B, S, D, V = 2, 8, 32, 128

    key = jax.random.PRNGKey(0)
    k_x, k_w, k_b = jax.random.split(key, 3)

    pooled_output = jax.random.normal(k_x, (B, S, D), dtype=jnp.float32)

    # Deterministic nn.Linear-style init: U(-1/sqrt(D), 1/sqrt(D)).
    bound = 1.0 / (D ** 0.5)
    weight = jax.random.uniform(k_w, (V, D), jnp.float32, -bound, bound)
    bias = jax.random.uniform(k_b, (V,), jnp.float32, -bound, bound)

    # One-time parameter prep (bf16 cast + (D, V) transpose + lane padding).
    w_t, b2d, vocab = prepare_classifier_params(weight, bias)

    logits = bimamba_mlm_head(pooled_output, w_t, b2d, vocab)
    jax.block_until_ready(logits)

    # Reference 1: same numerics (bf16 operands, f32 accumulation).
    xb = pooled_output.astype(jnp.bfloat16)
    wb = weight.astype(jnp.bfloat16)
    ref_bf16 = (
        jnp.einsum("bsd,vd->bsv", xb, wb, preferred_element_type=jnp.float32)
        + bias
    )
    # Reference 2: PyTorch f32 forward (eval-mode dropout == identity).
    ref_f32 = jnp.einsum("bsd,vd->bsv", pooled_output, weight) + bias

    assert logits.shape == (B, S, V)
    assert logits.dtype == jnp.float32
    assert jnp.allclose(logits, ref_bf16, atol=2e-3, rtol=2e-3)
    assert jnp.allclose(logits, ref_f32, atol=5e-2, rtol=5e-2)

    print("KERNEL_OK")
</pallas_src>

<mosaic_0001>
module attributes {stable_mosaic.version = 11 : i64} {
  func.func @_mlm_head_kernel(%arg0: i32, %arg1: i32, %arg2: memref<16x32xbf16, #tpu.memory_space<vmem>>, %arg3: memref<32x128xbf16, #tpu.memory_space<vmem>>, %arg4: memref<1x128xf32, #tpu.memory_space<vmem>>, %arg5: memref<16x128xf32, #tpu.memory_space<vmem>>) attributes {dimension_semantics = [#tpu.dimension_semantics<parallel>, #tpu.dimension_semantics<arbitrary>], iteration_bounds = array<i64: 1, 1>, scalar_prefetch = 0 : i64, scratch_operands = 0 : i64, tpu.core_type = #tpu.core_type<tc>, window_params = [{transform_indices = @transform_0, window_bounds = array<i64: 16, 32>}, {transform_indices = @transform_1, window_bounds = array<i64: 32, 128>}, {transform_indices = @transform_2, window_bounds = array<i64: 1, 128>}, {transform_indices = @transform_3, window_bounds = array<i64: 16, 128>}]} {
    %c0 = arith.constant 0 : index
    %c0_0 = arith.constant 0 : index
    %0 = vector.load %arg2[%c0, %c0_0] : memref<16x32xbf16, #tpu.memory_space<vmem>>, vector<16x32xbf16>
    %c0_1 = arith.constant 0 : index
    %c0_2 = arith.constant 0 : index
    %1 = vector.load %arg3[%c0_1, %c0_2] : memref<32x128xbf16, #tpu.memory_space<vmem>>, vector<32x128xbf16>
    %cst = arith.constant dense<0.000000e+00> : vector<16x128xf32>
    %2 = tpu.matmul %0, %1, %cst {dimension_numbers = #tpu.dot_dimension_numbers<[1], [0], [0], [1], [0, 0, 1, 1], [], []>} : vector<16x32xbf16>, vector<32x128xbf16>, vector<16x128xf32> -> vector<16x128xf32>
    %c0_3 = arith.constant 0 : index
    %c0_4 = arith.constant 0 : index
    %3 = vector.load %arg4[%c0_3, %c0_4] : memref<1x128xf32, #tpu.memory_space<vmem>>, vector<1x128xf32>
    %4 = vector.broadcast %3 : vector<1x128xf32> to vector<16x128xf32>
    %5 = arith.addf %2, %4 : vector<16x128xf32>
    %c0_5 = arith.constant 0 : index
    %c0_6 = arith.constant 0 : index
    %6 = vector.load %arg5[%c0_5, %c0_6] : memref<16x128xf32, #tpu.memory_space<vmem>>, vector<16x128xf32>
    tpu.vector_store %arg5[%c0_5, %c0_6], %5 {strides = array<i32>} : memref<16x128xf32, #tpu.memory_space<vmem>>, vector<16x128xf32>,
    return
  }
  func.func @transform_0(%arg0: i32, %arg1: i32) -> (i32, i32) {
    %c0_i32 = arith.constant 0 : i32
    %c0_i32_0 = arith.constant 0 : i32
    return %arg1, %c0_i32 : i32, i32
  }
  func.func @transform_1(%arg0: i32, %arg1: i32) -> (i32, i32) {
    %c0_i32 = arith.constant 0 : i32
    %c0_i32_0 = arith.constant 0 : i32
    return %c0_i32, %arg0 : i32, i32
  }
  func.func @transform_2(%arg0: i32, %arg1: i32) -> (i32, i32) {
    %c0_i32 = arith.constant 0 : i32
    %c0_i32_0 = arith.constant 0 : i32
    return %c0_i32, %arg0 : i32, i32
  }
  func.func @transform_3(%arg0: i32, %arg1: i32) -> (i32, i32) {
    %c0_i32 = arith.constant 0 : i32
    return %arg1, %arg0 : i32, i32
  }
}

</mosaic_0001>

<llo_original>
// kernel: bimamba_mlm_head.1
$region0: #{bimamba_mlm_head.1}
  #allocation0 [shape = 'u32[]', space=smem, size = 0x4, offset = 0x4, fixed_abs, tag = 'smem constant byte address 0x4 - core index']
  #allocation1 [shape = 'u32[144,128]{1,0:T(1,128)}', space=vmem, size = 0x12000, scoped, tag = 'internal scratch']
  %s0 = inlined_call_operand.vmem [shape: bf16[16,32], index: 0, kind: input, shape index: {}]
  %s1 = inlined_call_operand.vmem [shape: bf16[32,128], index: 1, kind: input, shape index: {}]
  %s2 = inlined_call_operand.vmem [shape: f32[1,128], index: 2, kind: input, shape index: {}]
  %s3 = inlined_call_operand.hbm [shape: f32[16,128], index: 3, kind: output, shape index: {}]
  %s4 = sld [smem:[#allocation0]]
  $region22: #{bimamba_mlm_head.1} parent=0
    _
  %s6 = ssub.s32 1, %s4
  %s7 = scalar_select 0, %s6, %s4
  $region1: #{bimamba_mlm_head.1} parent=0
    #allocation2 [shape = 'u8[8192]{0}', space=vmem, size = 0x2000, scoped, tag = 'output window, operand 0, single buffered']
    #allocation3 [shape = 's32[1]{0}', space=sflag, size = 0x4, scoped, tag = 'scoped memory for bimamba_mlm_head.1']
    %8 = vsyncpa [#allocation3], 0
    // Predicated region
    $region2: #{bimamba_mlm_head.1} parent=1 // pred_check
      _
    $region3: #{bimamba_mlm_head.1} parent=1 // pred_check_branch
      %10 = sbr.rel (0) target = $region5
    $region4: #{bimamba_mlm_head.1} parent=1 // pred_region
      _
    $region5: #{bimamba_mlm_head.1} parent=1 // pred_fallthru
      _
    // Predicated region
    $region6: #{bimamba_mlm_head.1} parent=1 // pred_check
      _
    $region7: #{bimamba_mlm_head.1} parent=1 // pred_check_branch
      %12 = sbr.rel (0) target = $region9
    $region8: #{bimamba_mlm_head.1} parent=1 // pred_region
      _
    $region9: #{bimamba_mlm_head.1} parent=1 // pred_fallthru
      _
    // Predicated region
    $region10: #{bimamba_mlm_head.1} parent=1 // pred_check
      _
    $region11: #{bimamba_mlm_head.1} parent=1 // pred_check_branch
      %14 = sbr.rel (0) target = $region13
    $region12: #{bimamba_mlm_head.1} parent=1 // pred_region
      _
    $region13: #{bimamba_mlm_head.1} parent=1 // pred_fallthru
      _
    %v16 = vld [vmem:[%s0] sm:$0xf]
    %v17 = vld [vmem:[%s0 + $0x4] sm:$0xf]
    %v18 = vld [vmem:[%s1] sm:$0xf]
    %v19 = vld [vmem:[%s1 + $0x4] sm:$0xf]
    %v20 = vld [vmem:[%s1 + $0x8] sm:$0xf]
    %v21 = vld [vmem:[%s1 + $0xc] sm:$0xf]
    %v22 = vld [vmem:[%s2] sm:$0x1]
    %v24 = vlaneseq
    %v25 = vshrl.u32 %v24, 7
    %v26 = vsub.s32 0, %v25
    %v27 = vrot.slane %v22, %v26
    %v31 = vunpack.c.l.b16 %v16
    %v32 = vunpack.c.l.b16 %v17
    %v33 = vpack.c.b16 %v32, %v31
    %v38 = vunpack.c.l.b16 %v18
    %v39 = vunpack.c.l.b16 %v19
    %v40 = vunpack.c.l.b16 %v20
    %v41 = vunpack.c.l.b16 %v21
    %v42 = vpack.c.b16 %v39, %v38
    %v43 = vpack.c.b16 %v41, %v40
    %vm46 = vcmask 261120
    %v48 = vsel %vm46, %v33, 0
    %50 = vmatprep.subr.bf16.mxu0 0
    %51 = vmatpush1.bf16.msra.mxu0 0
    %52 = vmatprep.subr.bf16.mxu0 0
    %53 = vmatpush1.bf16.msra.mxu0 0
    %54 = vmatprep.subr.bf16.mxu0 0
    %55 = vmatpush1.bf16.msra.mxu0 0
    %56 = vmatprep.subr.bf16.mxu0 0
    %57 = vmatpush1.bf16.msra.mxu0 0
    %58 = vmatprep.subr.bf16.mxu0 0
    %59 = vmatpush1.bf16.msra.mxu0 0
    %60 = vmatprep.subr.bf16.mxu0 0
    %61 = vmatpush1.bf16.msra.mxu0 0
    %62 = vmatprep.subr.bf16.mxu0 0
    %63 = vmatpush1.bf16.msra.mxu0 %v43
    %64 = vmatprep.subr.bf16.mxu0 0
    %65 = vmatpush1.bf16.msra.mxu0 %v42
    %66 = vmatprep.subr.bf16.mxu0 0
    %67 = vmatpush2.bf16.msra.mxu0 0
    %68 = vmatprep.subr.bf16.mxu0 0
    %69 = vmatpush2.bf16.msra.mxu0 0
    %70 = vmatprep.subr.bf16.mxu0 0
    %71 = vmatpush2.bf16.msra.mxu0 0
    %72 = vmatprep.subr.bf16.mxu0 0
    %73 = vmatpush2.bf16.msra.mxu0 0
    %74 = vmatprep.subr.bf16.mxu0 0
    %75 = vmatpush2.bf16.msra.mxu0 0
    %76 = vmatprep.subr.bf16.mxu0 0
    %77 = vmatpush2.bf16.msra.mxu0 0
    %78 = vmatprep.subr.bf16.mxu0 0
    %79 = vmatpush2.bf16.msra.mxu0 0
    %80 = vmatprep.subr.bf16.mxu0 0
    %81 = vmatpush2.bf16.msra.mxu0 0
    %82 = vmatprep.mubr.bf16.mxu0 0
    %83 = vmatmul.mubr.bf16.gmra.mxu0 %v48
    %v84 = vpop.f32.mrf.mxu0
    %v85 = vadd.f32 %v27, %v84
    %v86 = vpop.f32.mrf.mxu0
    %v87 = vpop.f32.mrf.mxu0
    %v88 = vadd.f32 %v27, %v87
    %v89 = vpop.f32.mrf.mxu0
    %90 = vdwg.mxu0
    %91 = vst [vmem:[#allocation2] sm:$0xff] %v85
    %92 = vst [vmem:[#allocation2 + $0x8] sm:$0xff] %v88
    // Predicated region
    $region14: #{bimamba_mlm_head.1} parent=1 // pred_check
      _
    $region15: #{bimamba_mlm_head.1} parent=1 // pred_check_branch
      %94 = sbr.rel (0) target = $region17
    $region16: #{bimamba_mlm_head.1} parent=1 // pred_region
      %s96 = ssub.s32 256, 256
      %97 = vsyncadd [#allocation3], %s96
      %s98 = sshll.u32 [#allocation2], 4
      %s99 = int_to_ptr.vmem [resolvable:$true] %s98
      %104 = dma.vmem_to_hbm [thread:$0]  %s99, 256, %s3, [#allocation3], 128, 128, 8
    $region17: #{bimamba_mlm_head.1} parent=1 // pred_fallthru
      _
    // Predicated region
    $region18: #{bimamba_mlm_head.1} parent=1 // pred_check
      _
    $region19: #{bimamba_mlm_head.1} parent=1 // pred_check_branch
      %106 = sbr.rel (0) target = $region21
    $region20: #{bimamba_mlm_head.1} parent=1 // pred_region
      %107 = dma.done [#allocation3], 256
    $region21: #{bimamba_mlm_head.1} parent=1 // pred_fallthru
      _
    %108 = vsyncpa [#allocation3], 1

</llo_original>
